<compile_context>
chip_gen: v5e
topology: v5e:2x2
jax: 0.10.0
libtpu: 0.0.40
codegen_flags: <defaults>
</compile_context>

<pallas_src>
from functools import partial

import jax
import jax.numpy as jnp
from jax import lax
from jax.experimental import pallas as pl
from jax.experimental.pallas import tpu as pltpu


# ----------------------------- kernel --------------------------------------- #

def _dilconv_bn_kernel(x_ref, a_ref, s_ref, gamma_ref, beta_ref, o_ref, acc_ref,
                       *, count, eps):
    """One grid step = one depthwise row-tap kh.

    x_ref:     (1, M, WpC)   bf16  pre-gathered input rows for tap kh (M = N*Ho)
    a_ref:     (1, WpC, WC)  bf16  folded depthwise(W taps) + 1x1 pointwise weights, tap kh
    s_ref:     (WC, Cout)    f32   channel selector (packed-lane <-> per-channel)
    gamma_ref: (1, Cout)     f32
    beta_ref:  (1, Cout)     f32
    o_ref:     (M, WC)       f32   lane-dense output, written only at the last tap
    acc_ref:   (M, WC)       f32   VMEM accumulator, resident across the kh grid axis
    """
    kh = pl.program_id(0)

    @pl.when(kh == 0)
    def _():
        acc_ref[...] = jnp.zeros_like(acc_ref)

    # ReLU commutes with the zero-padding / row gather (ReLU(0) = 0), so it is applied
    # per-slab here and the whole op stays fused in one kernel.
    rows = jnp.maximum(x_ref[0], 0)                                       # (M, WpC) bf16
    acc_ref[...] += jnp.dot(rows, a_ref[0],
                            preferred_element_type=jnp.float32)           # f32 accumulate

    @pl.when(kh == pl.num_programs(0) - 1)
    def _():
        y = acc_ref[...]                                                  # (M, WC) f32
        s = s_ref[...]
        inv_count = 1.0 / count

        # BatchNorm2d (training-mode batch stats), two-pass centered variance.
        # Per-channel reductions via the tiny selector matmul (keeps everything 2-D).
        rsum = jnp.sum(y, axis=0, keepdims=True)                          # (1, WC)
        mean = jnp.dot(rsum, s, preferred_element_type=jnp.float32) * inv_count     # (1, Cout)
        mean_row = lax.dot_general(mean, s, (((1,), (1,)), ((), ())),
                                   preferred_element_type=jnp.float32)    # (1, WC)
        yc = y - mean_row
        rsq = jnp.sum(yc * yc, axis=0, keepdims=True)                     # (1, WC)
        var = jnp.dot(rsq, s, preferred_element_type=jnp.float32) * inv_count       # (1, Cout)

        scale = gamma_ref[...] * lax.rsqrt(var + eps)                     # (1, Cout)
        shift = beta_ref[...] - mean * scale                              # (1, Cout)

        # Merge both lane-broadcasts into one selector matmul: stack [scale; shift]
        # as (2, Cout) (iota+where avoids a sublane concat), one dot_general against S.
        ri = lax.broadcasted_iota(jnp.int32, (2, scale.shape[1]), 0)
        ss = jnp.where(ri == 0, scale, shift)                             # (2, Cout)
        ss_row = lax.dot_general(ss, s, (((1,), (1,)), ((), ())),
                                 preferred_element_type=jnp.float32)      # (2, WC)
        o_ref[...] = y * ss_row[0:1] + ss_row[1:2]                        # lane-dense store


# ----------------------------- builder / wrapper ----------------------------- #

def make_dilconv(w_dw, w_pw, gamma, beta, *, H, W, stride, padding, dilation, eps=1e-5):
    """Fold weights once, return a jitted forward: (N, Cin, H, W) -> (N, Cout, Ho, Wo)."""
    C_in = w_dw.shape[0]
    C_out = w_pw.shape[0]
    K = w_dw.shape[-1]
    Ho = (H + 2 * padding - dilation * (K - 1) - 1) // stride + 1
    Wo = (W + 2 * padding - dilation * (K - 1) - 1) // stride + 1
    Hp, Wp = H + 2 * padding, W + 2 * padding
    WpC, WC = Wp * C_in, Wo * C_out

    # ---- weight-only folding (hoisted out of the per-forward hot path) ----
    wdw_kkc = jnp.transpose(w_dw[:, 0, :, :], (1, 2, 0)).astype(jnp.float32)    # (K, K, Cin)
    wpw_mat = jnp.transpose(w_pw[:, :, 0, 0], (1, 0)).astype(jnp.float32)       # (Cin, Cout)
    wcomb = wdw_kkc[:, :, :, None] * wpw_mat[None, None, :, :]                  # (K, K, Cin, Cout)
    # A[kh, p*Cin + k, w*Cout + c] = sum_kw [p == w*stride + kw*dil] * Wdw[kh,kw,k] * Wpw[k,c]
    in_col = jnp.arange(Wo)[None, :] * stride + jnp.arange(K)[:, None] * dilation  # (kw, Wo)
    onehot = jax.nn.one_hot(in_col, Wp, dtype=jnp.float32)                      # (kw, Wo, Wp)
    A = jnp.einsum('xwp,hxkc->hpkwc', onehot, wcomb).reshape(K, WpC, WC)
    A = A.astype(jnp.bfloat16)                                                  # bf16 MXU operand
    S = jnp.tile(jnp.eye(C_out, dtype=jnp.float32), (Wo, 1))                    # (WC, Cout)
    gamma_row = gamma.reshape(1, C_out).astype(jnp.float32)
    beta_row = beta.reshape(1, C_out).astype(jnp.float32)
    # Row indices of the kh-th depthwise tap in the padded input (handles any stride).
    row_idx = jnp.arange(K)[:, None] * dilation + jnp.arange(Ho)[None, :] * stride  # (K, Ho)

    @jax.jit
    def forward(x_nchw):
        N = x_nchw.shape[0]
        M = N * Ho

        # Layout glue (interface only — a channels-last pipeline would skip this):
        # NCHW -> padded packed channels-last, then pre-gather the K row windows so the
        # kernel sees sublane-aligned (M, WpC) slabs, one per tap, aligned with the kh grid.
        x = jnp.transpose(x_nchw, (0, 2, 3, 1)).astype(jnp.float32)
        x = jnp.pad(x, ((0, 0), (padding, padding), (padding, padding), (0, 0)))
        x = x.reshape(N, Hp, WpC)
        xg = x[:, row_idx, :]                                                   # (N, K, Ho, WpC)
        xg = jnp.transpose(xg, (1, 0, 2, 3)).reshape(K, M, WpC).astype(jnp.bfloat16)

        flops = 2 * K * M * WpC * WC
        bytes_accessed = (K * M * WpC * 2 + K * WpC * WC * 2
                          + WC * C_out * 4 + 2 * C_out * 4 + M * WC * 4)

        out2d = pl.pallas_call(
            partial(_dilconv_bn_kernel, count=float(N * Ho * Wo), eps=eps),
            grid=(K,),
            in_specs=[
                pl.BlockSpec((1, M, WpC), lambda kh: (kh, 0, 0)),     # per-tap input slab
                pl.BlockSpec((1, WpC, WC), lambda kh: (kh, 0, 0)),    # per-tap folded weights
                pl.BlockSpec((WC, C_out), lambda kh: (0, 0)),         # resident across grid
                pl.BlockSpec((1, C_out), lambda kh: (0, 0)),
                pl.BlockSpec((1, C_out), lambda kh: (0, 0)),
            ],
            out_specs=pl.BlockSpec((M, WC), lambda kh: (0, 0)),       # resident; stored at kh=K-1
            out_shape=jax.ShapeDtypeStruct((M, WC), jnp.float32),
            scratch_shapes=[pltpu.VMEM((M, WC), jnp.float32)],
            compiler_params=pltpu.CompilerParams(
                dimension_semantics=("arbitrary",),                   # kh is a reduction axis
                vmem_limit_bytes=32 * 1024 * 1024),
            cost_estimate=pl.CostEstimate(flops=flops, transcendentals=C_out,
                                          bytes_accessed=bytes_accessed),
        )(xg, A, S, gamma_row, beta_row)

        out = out2d.reshape(N, Ho, Wo, C_out)
        return jnp.transpose(out, (0, 3, 1, 2))                       # back to NCHW

    return forward


# ----------------------------- reference ------------------------------------ #

def dilconv_reference(x, w_dw, w_pw, gamma, beta, *, stride, padding, dilation, eps=1e-5):
    """Pure-JAX f32 reference matching the PyTorch module (training-mode BN)."""
    xr = jnp.maximum(x, 0.0)
    Cin = x.shape[1]
    dw = jax.lax.conv_general_dilated(
        xr, w_dw, window_strides=(stride, stride),
        padding=[(padding, padding), (padding, padding)],
        rhs_dilation=(dilation, dilation),
        feature_group_count=Cin,
        dimension_numbers=('NCHW', 'OIHW', 'NCHW'))
    pw = jax.lax.conv_general_dilated(
        dw, w_pw, window_strides=(1, 1), padding=[(0, 0), (0, 0)],
        dimension_numbers=('NCHW', 'OIHW', 'NCHW'))
    mean = jnp.mean(pw, axis=(0, 2, 3), keepdims=True)
    var = jnp.mean((pw - mean) ** 2, axis=(0, 2, 3), keepdims=True)
    g = gamma.reshape(1, -1, 1, 1)
    b = beta.reshape(1, -1, 1, 1)
    return (pw - mean) * g * jax.lax.rsqrt(var + eps) + b


# ----------------------------- main ----------------------------------------- #

if __name__ == "__main__":
    # DilConv(C_in=8, C_out=16, kernel_size=3, stride=1, padding=2, dilation=2)
    N, C_in, C_out, H, W = 2, 8, 16, 16, 16
    K, stride, padding, dilation = 3, 1, 2, 2

    key = jax.random.PRNGKey(0)
    kx, kdw, kpw, kg, kb = jax.random.split(key, 5)

    x = jax.random.normal(kx, (N, C_in, H, W), dtype=jnp.float32)
    w_dw = jax.random.normal(kdw, (C_in, 1, K, K), dtype=jnp.float32) * 0.2
    w_pw = jax.random.normal(kpw, (C_out, C_in, 1, 1), dtype=jnp.float32) * 0.2
    gamma = 1.0 + 0.1 * jax.random.normal(kg, (C_out,), dtype=jnp.float32)
    beta = 0.1 * jax.random.normal(kb, (C_out,), dtype=jnp.float32)

    forward = make_dilconv(w_dw, w_pw, gamma, beta, H=H, W=W,
                           stride=stride, padding=padding, dilation=dilation)
    out = jax.block_until_ready(forward(x))

    ref = jax.block_until_ready(
        dilconv_reference(x, w_dw, w_pw, gamma, beta,
                          stride=stride, padding=padding, dilation=dilation))

    assert out.shape == (N, C_out, H, W), out.shape
    # bf16 matmul operands -> loosened tolerance (BN math and accumulation remain f32).
    max_err = float(jnp.max(jnp.abs(out - ref)))
    assert jnp.allclose(out, ref, atol=5e-2, rtol=5e-2), max_err

    # TODO(synk): BatchNorm running-stat (momentum) buffer updates are not modeled; the
    # forward output matches the PyTorch module in training mode (batch statistics).
    print("KERNEL_OK")
</pallas_src>

<mosaic_0001>
module attributes {stable_mosaic.version = 11 : i64} {
  func.func @_dilconv_bn_kernel(%arg0: i32, %arg1: memref<1x32x160xbf16, #tpu.memory_space<vmem>>, %arg2: memref<1x160x256xbf16, #tpu.memory_space<vmem>>, %arg3: memref<256x16xf32, #tpu.memory_space<vmem>>, %arg4: memref<1x16xf32, #tpu.memory_space<vmem>>, %arg5: memref<1x16xf32, #tpu.memory_space<vmem>>, %arg6: memref<32x256xf32, #tpu.memory_space<vmem>>, %arg7: memref<32x256xf32, #tpu.memory_space<vmem>>) attributes {dimension_semantics = [#tpu.dimension_semantics<arbitrary>], iteration_bounds = array<i64: 3>, scalar_prefetch = 0 : i64, scratch_operands = 1 : i64, tpu.core_type = #tpu.core_type<tc>, window_params = [{transform_indices = @transform_0, window_bounds = array<i64: 1, 32, 160>}, {transform_indices = @transform_1, window_bounds = array<i64: 1, 160, 256>}, {pipeline_mode = #tpu.pipeline_mode<synchronous>, transform_indices = @transform_2, window_bounds = array<i64: 256, 16>}, {pipeline_mode = #tpu.pipeline_mode<synchronous>, transform_indices = @transform_3, window_bounds = array<i64: 1, 16>}, {pipeline_mode = #tpu.pipeline_mode<synchronous>, transform_indices = @transform_4, window_bounds = array<i64: 1, 16>}, {pipeline_mode = #tpu.pipeline_mode<synchronous>, transform_indices = @transform_5, window_bounds = array<i64: 32, 256>}]} {
    %c0_i32 = arith.constant 0 : i32
    %0 = arith.cmpi eq, %arg0, %c0_i32 : i32
    %1 = arith.extui %0 : i1 to i32
    %c0_i32_0 = arith.constant 0 : i32
    %2 = arith.cmpi ne, %1, %c0_i32_0 : i32
    scf.if %2 {
      %cst_12 = arith.constant 0.000000e+00 : f32
      %16 = vector.broadcast %cst_12 : f32 to vector<32x256xf32>
      %c0_13 = arith.constant 0 : index
      %c0_14 = arith.constant 0 : index
      %17 = vector.load %arg7[%c0_13, %c0_14] : memref<32x256xf32, #tpu.memory_space<vmem>>, vector<32x256xf32>
      tpu.vector_store %arg7[%c0_13, %c0_14], %16 {strides = array<i32>} : memref<32x256xf32, #tpu.memory_space<vmem>>, vector<32x256xf32>,
    } else {
    }
    %c0 = arith.constant 0 : index
    %c0_1 = arith.constant 0 : index
    %c0_2 = arith.constant 0 : index
    %3 = vector.load %arg1[%c0, %c0_1, %c0_2] : memref<1x32x160xbf16, #tpu.memory_space<vmem>>, vector<1x32x160xbf16>
    %4 = vector.shape_cast %3 : vector<1x32x160xbf16> to vector<32x160xbf16>
    %cst = arith.constant 0.000000e+00 : bf16
    %5 = vector.broadcast %cst : bf16 to vector<32x160xbf16>
    %6 = arith.maximumf %4, %5 : vector<32x160xbf16>
    %c0_3 = arith.constant 0 : index
    %c0_4 = arith.constant 0 : index
    %7 = vector.load %arg7[%c0_3, %c0_4] : memref<32x256xf32, #tpu.memory_space<vmem>>, vector<32x256xf32>
    %c0_5 = arith.constant 0 : index
    %c0_6 = arith.constant 0 : index
    %c0_7 = arith.constant 0 : index
    %8 = vector.load %arg2[%c0_5, %c0_6, %c0_7] : memref<1x160x256xbf16, #tpu.memory_space<vmem>>, vector<1x160x256xbf16>
    %9 = vector.shape_cast %8 : vector<1x160x256xbf16> to vector<160x256xbf16>
    %cst_8 = arith.constant dense<0.000000e+00> : vector<32x256xf32>
    %10 = tpu.matmul %6, %9, %cst_8 {dimension_numbers = #tpu.dot_dimension_numbers<[1], [0], [0], [1], [0, 0, 1, 1], [], []>} : vector<32x160xbf16>, vector<160x256xbf16>, vector<32x256xf32> -> vector<32x256xf32>
    %11 = arith.addf %7, %10 : vector<32x256xf32>
    %c0_9 = arith.constant 0 : index
    %c0_10 = arith.constant 0 : index
    %12 = vector.load %arg7[%c0_9, %c0_10] : memref<32x256xf32, #tpu.memory_space<vmem>>, vector<32x256xf32>
    tpu.vector_store %arg7[%c0_9, %c0_10], %11 {strides = array<i32>} : memref<32x256xf32, #tpu.memory_space<vmem>>, vector<32x256xf32>,
    %c2_i32 = arith.constant 2 : i32
    %13 = arith.cmpi eq, %arg0, %c2_i32 : i32
    %14 = arith.extui %13 : i1 to i32
    %c0_i32_11 = arith.constant 0 : i32
    %15 = arith.cmpi ne, %14, %c0_i32_11 : i32
    scf.if %15 {
      %c0_12 = arith.constant 0 : index
      %c0_13 = arith.constant 0 : index
      %16 = vector.load %arg7[%c0_12, %c0_13] : memref<32x256xf32, #tpu.memory_space<vmem>>, vector<32x256xf32>
      %c0_14 = arith.constant 0 : index
      %c0_15 = arith.constant 0 : index
      %17 = vector.load %arg3[%c0_14, %c0_15] : memref<256x16xf32, #tpu.memory_space<vmem>>, vector<256x16xf32>
      %cst_16 = arith.constant dense<0.000000e+00> : vector<256xf32>
      %18 = vector.multi_reduction <add>, %16, %cst_16 [0] : vector<32x256xf32> to vector<256xf32>
      %19 = vector.shape_cast %18 : vector<256xf32> to vector<1x256xf32>
      %cst_17 = arith.constant dense<0.000000e+00> : vector<1x16xf32>
      %20 = tpu.matmul %19, %17, %cst_17 {dimension_numbers = #tpu.dot_dimension_numbers<[1], [0], [0], [1], [0, 0, 1, 1], [], []>} : vector<1x256xf32>, vector<256x16xf32>, vector<1x16xf32> -> vector<1x16xf32>
      %cst_18 = arith.constant 0.001953125 : f32
      %21 = vector.broadcast %cst_18 : f32 to vector<1x16xf32>
      %22 = arith.mulf %20, %21 : vector<1x16xf32>
      %cst_19 = arith.constant dense<0.000000e+00> : vector<1x256xf32>
      %23 = tpu.matmul %22, %17, %cst_19 {dimension_numbers = #tpu.dot_dimension_numbers<[1], [1], [0], [0], [0, 0, 1, 0], [], []>} : vector<1x16xf32>, vector<256x16xf32>, vector<1x256xf32> -> vector<1x256xf32>
      %24 = vector.broadcast %23 : vector<1x256xf32> to vector<32x256xf32>
      %25 = arith.subf %16, %24 : vector<32x256xf32>
      %26 = arith.mulf %25, %25 : vector<32x256xf32>
      %cst_20 = arith.constant dense<0.000000e+00> : vector<256xf32>
      %27 = vector.multi_reduction <add>, %26, %cst_20 [0] : vector<32x256xf32> to vector<256xf32>
      %28 = vector.shape_cast %27 : vector<256xf32> to vector<1x256xf32>
      %cst_21 = arith.constant dense<0.000000e+00> : vector<1x16xf32>
      %29 = tpu.matmul %28, %17, %cst_21 {dimension_numbers = #tpu.dot_dimension_numbers<[1], [0], [0], [1], [0, 0, 1, 1], [], []>} : vector<1x256xf32>, vector<256x16xf32>, vector<1x16xf32> -> vector<1x16xf32>
      %cst_22 = arith.constant 0.001953125 : f32
      %30 = vector.broadcast %cst_22 : f32 to vector<1x16xf32>
      %31 = arith.mulf %29, %30 : vector<1x16xf32>
      %c0_23 = arith.constant 0 : index
      %c0_24 = arith.constant 0 : index
      %32 = vector.load %arg4[%c0_23, %c0_24] : memref<1x16xf32, #tpu.memory_space<vmem>>, vector<1x16xf32>
      %cst_25 = arith.constant 9.99999974E-6 : f32
      %33 = vector.broadcast %cst_25 : f32 to vector<1x16xf32>
      %34 = arith.addf %31, %33 : vector<1x16xf32>
      %35 = math.rsqrt %34 : vector<1x16xf32>
      %36 = arith.mulf %32, %35 : vector<1x16xf32>
      %c0_26 = arith.constant 0 : index
      %c0_27 = arith.constant 0 : index
      %37 = vector.load %arg5[%c0_26, %c0_27] : memref<1x16xf32, #tpu.memory_space<vmem>>, vector<1x16xf32>
      %38 = arith.mulf %22, %36 : vector<1x16xf32>
      %39 = arith.subf %37, %38 : vector<1x16xf32>
      %40 = tpu.iota {dimensions = array<i32: 0>} : vector<2x16xi32>
      %c0_i32_28 = arith.constant 0 : i32
      %41 = vector.broadcast %c0_i32_28 : i32 to vector<2x16xi32>
      %42 = arith.cmpi eq, %40, %41 : vector<2x16xi32>
      %43 = vector.shape_cast %36 : vector<1x16xf32> to vector<1x16xf32>
      %44 = vector.broadcast %43 : vector<1x16xf32> to vector<2x16xf32>
      %45 = vector.shape_cast %39 : vector<1x16xf32> to vector<1x16xf32>
      %46 = vector.broadcast %45 : vector<1x16xf32> to vector<2x16xf32>
      %47 = arith.select %42, %44, %46 : vector<2x16xi1>, vector<2x16xf32>
      %cst_29 = arith.constant dense<0.000000e+00> : vector<2x256xf32>
      %48 = tpu.matmul %47, %17, %cst_29 {dimension_numbers = #tpu.dot_dimension_numbers<[1], [1], [0], [0], [0, 0, 1, 0], [], []>} : vector<2x16xf32>, vector<256x16xf32>, vector<2x256xf32> -> vector<2x256xf32>
      %49 = vector.extract_strided_slice %48 {offsets = [0, 0], sizes = [1, 256], strides = [1, 1]} : vector<2x256xf32> to vector<1x256xf32>
      %50 = vector.broadcast %49 : vector<1x256xf32> to vector<32x256xf32>
      %51 = arith.mulf %16, %50 : vector<32x256xf32>
      %52 = vector.extract_strided_slice %48 {offsets = [1, 0], sizes = [1, 256], strides = [1, 1]} : vector<2x256xf32> to vector<1x256xf32>
      %53 = vector.broadcast %52 : vector<1x256xf32> to vector<32x256xf32>
      %54 = arith.addf %51, %53 : vector<32x256xf32>
      %c0_30 = arith.constant 0 : index
      %c0_31 = arith.constant 0 : index
      %55 = vector.load %arg6[%c0_30, %c0_31] : memref<32x256xf32, #tpu.memory_space<vmem>>, vector<32x256xf32>
      tpu.vector_store %arg6[%c0_30, %c0_31], %54 {strides = array<i32>} : memref<32x256xf32, #tpu.memory_space<vmem>>, vector<32x256xf32>,
    } else {
    }
    return
  }
  func.func @transform_0(%arg0: i32) -> (i32, i32, i32) {
    %c0_i32 = arith.constant 0 : i32
    %c0_i32_0 = arith.constant 0 : i32
    %c0_i32_1 = arith.constant 0 : i32
    return %arg0, %c0_i32, %c0_i32_0 : i32, i32, i32
  }
  func.func @transform_1(%arg0: i32) -> (i32, i32, i32) {
    %c0_i32 = arith.constant 0 : i32
    %c0_i32_0 = arith.constant 0 : i32
    %c0_i32_1 = arith.constant 0 : i32
    return %arg0, %c0_i32, %c0_i32_0 : i32, i32, i32
  }
  func.func @transform_2(%arg0: i32) -> (i32, i32) {
    %c0_i32 = arith.constant 0 : i32
    %c0_i32_0 = arith.constant 0 : i32
    %c0_i32_1 = arith.constant 0 : i32
    return %c0_i32, %c0_i32_0 : i32, i32
  }
  func.func @transform_3(%arg0: i32) -> (i32, i32) {
    %c0_i32 = arith.constant 0 : i32
    %c0_i32_0 = arith.constant 0 : i32
    %c0_i32_1 = arith.constant 0 : i32
    return %c0_i32, %c0_i32_0 : i32, i32
  }
  func.func @transform_4(%arg0: i32) -> (i32, i32) {
    %c0_i32 = arith.constant 0 : i32
    %c0_i32_0 = arith.constant 0 : i32
    %c0_i32_1 = arith.constant 0 : i32
    return %c0_i32, %c0_i32_0 : i32, i32
  }
  func.func @transform_5(%arg0: i32) -> (i32, i32) {
    %c0_i32 = arith.constant 0 : i32
    %c0_i32_0 = arith.constant 0 : i32
    %c0_i32_1 = arith.constant 0 : i32
    return %c0_i32, %c0_i32_0 : i32, i32
  }
}

</mosaic_0001>

<llo_original>
// kernel: forward.1
$region0: #{forward.1}
  #allocation0 [shape = 'u32[]', space=smem, size = 0x4, offset = 0x4, fixed_abs, tag = 'smem constant byte address 0x4 - core index']
  #allocation1 [shape = 'u32[72,128]{1,0:T(1,128)}', space=vmem, size = 0x9000, scoped, tag = 'internal scratch']
  #allocation2 [shape = 'f32[32,256]{1,0:T(8,128)}', space=vmem, size = 0x8000, scoped, tag = 'scratch operand']
  %s0 = inlined_call_operand.vmem [shape: bf16[3,32,160], index: 0, kind: input, shape index: {}]
  %s1 = inlined_call_operand.vmem [shape: bf16[3,160,256], index: 1, kind: input, shape index: {}]
  %s2 = inlined_call_operand.vmem [shape: f32[256,16], index: 2, kind: input, shape index: {}]
  %s3 = inlined_call_operand.vmem [shape: f32[1,16], index: 3, kind: input, shape index: {}]
  %s4 = inlined_call_operand.vmem [shape: f32[1,16], index: 4, kind: input, shape index: {}]
  %s5 = inlined_call_operand.vmem [shape: f32[32,256], index: 5, kind: output, shape index: {}]
  %s6 = sld [smem:[#allocation0]]
  $region61: #{forward.1} parent=0
    _
  %s8 = ssub.s32 1, %s6
  %s9 = scalar_select 0, %s8, %s6
  loop: start=0, step=1, limit=5
  $region2: #{forward.1} parent=0 // loop_pre_header
    _
  $region3: #{forward.1} parent=0 // loop_header
    %s11 = sphi 0, %s15
    %p12 = scmp.ge.s32.totalorder %s11, 5
    %s21 = sphi 0, %s23
    %s24 = sphi 0, %s21
    %s25 = sphi 0, %s24
    %s41 = sphi 0, %s25
    %s47 = sphi 0, %s49
    %s50 = sphi 0, %s47
    %s51 = sphi 0, %s50
    %s67 = sphi 0, %s51
    %s71 = sphi 0, %s71
    %s73 = sphi 0, %s71
    %s74 = sphi 0, %s73
    %s88 = sphi 0, %s74
    %s92 = sphi 0, %s92
    %s94 = sphi 0, %s92
    %s95 = sphi 0, %s94
    %s109 = sphi 0, %s95
    %s113 = sphi 0, %s113
    %s115 = sphi 0, %s113
    %s116 = sphi 0, %s115
    %s130 = sphi 0, %s116
    %s134 = sphi 0, %s134
    %s136 = sphi 0, %s134
    %s137 = sphi 0, %s136
    %s151 = sphi 0, %s137
  $region4: #{forward.1} parent=0 // loop_header_branch
    %14 = sbr.rel (%p12) target = $region8
  $region5: #{forward.1} parent=0 // loop_body
    %s16 = ssub.s32 %s11, 1
    %s17 = ssub.s32 %s11, 2
    %s18 = sadd.s32 %s11, 1
    %s19 = ssub.s32 %s11, %s18
    %p20 = scmp.eq.s32.totalorder %s19, 0
    %s22 = sadd.s32 %s21, 1
    %s23 = scalar_select %p20, %s21, %s22
    %p26 = pneg %p20
    %p27 = scmp.eq.s32.totalorder %s11, 2
    %p28 = por %p26, %p27
    %p29 = scmp.ne.s32.totalorder %s21, %s24
    %p30 = scmp.eq.s32.totalorder %s11, 0
    %p31 = por %p29, %p30
    %p32 = scmp.ne.s32.totalorder %s21, %s24
    %p33 = scmp.eq.s32.totalorder %s16, 2
    %p34 = por %p32, %p33
    %p35 = scmp.ne.s32.totalorder %s24, %s25
    %p36 = scmp.eq.s32.totalorder %s16, 0
    %p37 = por %p35, %p36
    %p38 = scmp.ne.s32.totalorder %s24, %s25
    %p39 = scmp.eq.s32.totalorder %s17, 2
    %p40 = por %p38, %p39
    %p42 = scmp.ne.s32.totalorder %s25, %s41
    %p43 = scmp.eq.s32.totalorder %s17, 0
    %p44 = por %p42, %p43
    %s45 = ssub.s32 %s11, %s18
    %p46 = scmp.eq.s32.totalorder %s45, 0
    %s48 = sadd.s32 %s47, 1
    %s49 = scalar_select %p46, %s47, %s48
    %p52 = pneg %p46
    %p53 = scmp.eq.s32.totalorder %s11, 2
    %p54 = por %p52, %p53
    %p55 = scmp.ne.s32.totalorder %s47, %s50
    %p56 = scmp.eq.s32.totalorder %s11, 0
    %p57 = por %p55, %p56
    %p58 = scmp.ne.s32.totalorder %s47, %s50
    %p59 = scmp.eq.s32.totalorder %s16, 2
    %p60 = por %p58, %p59
    %p61 = scmp.ne.s32.totalorder %s50, %s51
    %p62 = scmp.eq.s32.totalorder %s16, 0
    %p63 = por %p61, %p62
    %p64 = scmp.ne.s32.totalorder %s50, %s51
    %p65 = scmp.eq.s32.totalorder %s17, 2
    %p66 = por %p64, %p65
    %p68 = scmp.ne.s32.totalorder %s51, %s67
    %p69 = scmp.eq.s32.totalorder %s17, 0
    %p70 = por %p68, %p69
    %s72 = sadd.s32 %s71, 1
    %p75 = scmp.eq.s32.totalorder %s11, 2
    %p76 = scmp.ne.s32.totalorder %s71, %s73
    %p77 = scmp.eq.s32.totalorder %s11, 0
    %p78 = por %p76, %p77
    %p79 = scmp.ne.s32.totalorder %s71, %s73
    %p80 = scmp.eq.s32.totalorder %s16, 2
    %p81 = por %p79, %p80
    %p82 = scmp.ne.s32.totalorder %s73, %s74
    %p83 = scmp.eq.s32.totalorder %s16, 0
    %p84 = por %p82, %p83
    %p85 = scmp.ne.s32.totalorder %s73, %s74
    %p86 = scmp.eq.s32.totalorder %s17, 2
    %p87 = por %p85, %p86
    %p89 = scmp.ne.s32.totalorder %s74, %s88
    %p90 = scmp.eq.s32.totalorder %s17, 0
    %p91 = por %p89, %p90
    %s93 = sadd.s32 %s92, 1
    %p96 = scmp.eq.s32.totalorder %s11, 2
    %p97 = scmp.ne.s32.totalorder %s92, %s94
    %p98 = scmp.eq.s32.totalorder %s11, 0
    %p99 = por %p97, %p98
    %p100 = scmp.ne.s32.totalorder %s92, %s94
    %p101 = scmp.eq.s32.totalorder %s16, 2
    %p102 = por %p100, %p101
    %p103 = scmp.ne.s32.totalorder %s94, %s95
    %p104 = scmp.eq.s32.totalorder %s16, 0
    %p105 = por %p103, %p104
    %p106 = scmp.ne.s32.totalorder %s94, %s95
    %p107 = scmp.eq.s32.totalorder %s17, 2
    %p108 = por %p106, %p107
    %p110 = scmp.ne.s32.totalorder %s95, %s109
    %p111 = scmp.eq.s32.totalorder %s17, 0
    %p112 = por %p110, %p111
    %s114 = sadd.s32 %s113, 1
    %p117 = scmp.eq.s32.totalorder %s11, 2
    %p118 = scmp.ne.s32.totalorder %s113, %s115
    %p119 = scmp.eq.s32.totalorder %s11, 0
    %p120 = por %p118, %p119
    %p121 = scmp.ne.s32.totalorder %s113, %s115
    %p122 = scmp.eq.s32.totalorder %s16, 2
    %p123 = por %p121, %p122
    %p124 = scmp.ne.s32.totalorder %s115, %s116
    %p125 = scmp.eq.s32.totalorder %s16, 0
    %p126 = por %p124, %p125
    %p127 = scmp.ne.s32.totalorder %s115, %s116
    %p128 = scmp.eq.s32.totalorder %s17, 2
    %p129 = por %p127, %p128
    %p131 = scmp.ne.s32.totalorder %s116, %s130
    %p132 = scmp.eq.s32.totalorder %s17, 0
    %p133 = por %p131, %p132
    %s135 = sadd.s32 %s134, 1
    %p138 = scmp.eq.s32.totalorder %s11, 2
    %p139 = scmp.ne.s32.totalorder %s134, %s136
    %p140 = scmp.eq.s32.totalorder %s11, 0
    %p141 = por %p139, %p140
    %p142 = scmp.ne.s32.totalorder %s134, %s136
    %p143 = scmp.eq.s32.totalorder %s16, 2
    %p144 = por %p142, %p143
    %p145 = scmp.ne.s32.totalorder %s136, %s137
    %p146 = scmp.eq.s32.totalorder %s16, 0
    %p147 = por %p145, %p146
    %p148 = scmp.ne.s32.totalorder %s136, %s137
    %p149 = scmp.eq.s32.totalorder %s17, 2
    %p150 = por %p148, %p149
    %p152 = scmp.ne.s32.totalorder %s137, %s151
    %p153 = scmp.eq.s32.totalorder %s17, 0
    %p154 = por %p152, %p153
    %p155 = scmp.le.s32.totalorder 1, %s11
    %p156 = scmp.lt.s32.totalorder %s11, 4
    %p157 = pnand %p155, %p156
    %p158 = pneg %p157
    // Predicated region
    $region9: #{forward.1} parent=5 // pred_check
      _
    $region10: #{forward.1} parent=5 // pred_check_branch
      %160 = sbr.rel (%p157) target = $region12
    $region11: #{forward.1} parent=5 // pred_region
      %s161 = ssub.s32 %s11, 1
      // Predicated region
      $region13: #{forward.1} parent=11 // pred_check
        %p162 = pneg %p84
      $region14: #{forward.1} parent=11 // pred_check_branch
        %164 = sbr.rel (%p162) target = $region16
      $region15: #{forward.1} parent=11 // pred_region
        _
      $region16: #{forward.1} parent=11 // pred_fallthru
        _
      // Predicated region
      $region17: #{forward.1} parent=11 // pred_check
        %p165 = pneg %p105
      $region18: #{forward.1} parent=11 // pred_check_branch
        %167 = sbr.rel (%p165) target = $region20
      $region19: #{forward.1} parent=11 // pred_region
        _
      $region20: #{forward.1} parent=11 // pred_fallthru
        _
      // Predicated region
      $region21: #{forward.1} parent=11 // pred_check
        %p168 = pneg %p126
      $region22: #{forward.1} parent=11 // pred_check_branch
        %170 = sbr.rel (%p168) target = $region24
      $region23: #{forward.1} parent=11 // pred_region
        _
      $region24: #{forward.1} parent=11 // pred_fallthru
        _
    $region12: #{forward.1} parent=5 // pred_fallthru
      _
    %p171 = scmp.lt.s32.totalorder %s11, 3
    // Predicated region
    $region25: #{forward.1} parent=5 // pred_check
      %p172 = pneg %p171
    $region26: #{forward.1} parent=5 // pred_check_branch
      %174 = sbr.rel (%p172) target = $region28
    $region27: #{forward.1} parent=5 // pred_region
      // Predicated region
      $region29: #{forward.1} parent=27 // pred_check
        %p175 = pneg %p31
      $region30: #{forward.1} parent=27 // pred_check_branch
        %177 = sbr.rel (%p175) target = $region32
      $region31: #{forward.1} parent=27 // pred_region
        %p178 = scmp.lt.s32.totalorder %s11, 2
        %s179 = scalar_select %p178, %s11, 2
        %s180 = smul.addr %s179, 8
        %s181 = smul.addr %s180, 4
        %s182 = scalar_lea.vmem %s0, %s181
      $region32: #{forward.1} parent=27 // pred_fallthru
        _
      // Predicated region
      $region33: #{forward.1} parent=27 // pred_check
        %p183 = pneg %p57
      $region34: #{forward.1} parent=27 // pred_check_branch
        %185 = sbr.rel (%p183) target = $region36
      $region35: #{forward.1} parent=27 // pred_region
        %p186 = scmp.lt.s32.totalorder %s11, 2
        %s187 = scalar_select %p186, %s11, 2
        %s188 = smul.addr %s187, 40
        %s189 = smul.addr %s188, 4
        %s190 = scalar_lea.vmem %s1, %s189
      $region36: #{forward.1} parent=27 // pred_fallthru
        _
    $region28: #{forward.1} parent=5 // pred_fallthru
      _
    %p191 = scmp.le.s32.totalorder 1, %s11
    %p192 = scmp.lt.s32.totalorder %s11, 4
    %p193 = pnand %p191, %p192
    %p194 = pneg %p193
    // Predicated region
    $region37: #{forward.1} parent=5 // pred_check
      _
    $region38: #{forward.1} parent=5 // pred_check_branch
      %196 = sbr.rel (%p193) target = $region40
    $region39: #{forward.1} parent=5 // pred_region
      %s197 = ssub.s32 %s11, 1
      %p198 = scmp.lt.s32.totalorder %s16, 2
      %s199 = scalar_select %p198, %s16, 2
      %s200 = smul.addr %s199, 8
      %s201 = smul.addr %s200, 4
      %s202 = scalar_lea.vmem %s0, %s201
      %p203 = pneg %p37
      %p204 = pneg %p34
      %p205 = scmp.lt.s32.totalorder %s16, 2
      %s206 = scalar_select %p205, %s16, 2
      %s207 = smul.addr %s206, 40
      %s208 = smul.addr %s207, 4
      %s209 = scalar_lea.vmem %s1, %s208
      %p210 = pneg %p63
      %p211 = pneg %p60
      %p212 = pneg %p84
      %p213 = pneg %p81
      %p214 = pneg %p105
      %p215 = pneg %p102
      %p216 = pneg %p126
      %p217 = pneg %p123
      %p218 = pneg %p147
      %p219 = pneg %p144
      %p220 = scmp.lt.s32.totalorder %s16, 2
      %s221 = scalar_select %p220, %s16, 2
      %s222 = smul.addr %s221, 8
      %s223 = smul.addr %s222, 4
      %s224 = scalar_lea.vmem %s0, %s223
      %p225 = scmp.lt.s32.totalorder %s16, 2
      %s226 = scalar_select %p225, %s16, 2
      %s227 = smul.addr %s226, 40
      %s228 = smul.addr %s227, 4
      %s229 = scalar_lea.vmem %s1, %s228
      %p231 = scmp.eq.s32.totalorder %s16, 0
      // Predicated region
      $region41: #{forward.1} parent=39 // pred_check
        %p232 = pneg %p231
      $region42: #{forward.1} parent=39 // pred_check_branch
        %234 = sbr.rel (%p232) target = $region44
      $region43: #{forward.1} parent=39 // pred_region
        %235 = vst [vmem:[#allocation2] sm:$0xff] 0.0
        %236 = vst [vmem:[#allocation2 + $0x8] sm:$0xff] 0.0
        %237 = vst [vmem:[#allocation2 + $0x10] sm:$0xff] 0.0
        %238 = vst [vmem:[#allocation2 + $0x18] sm:$0xff] 0.0
        %239 = vst [vmem:[#allocation2 + $0x20] sm:$0xff] 0.0
        %240 = vst [vmem:[#allocation2 + $0x28] sm:$0xff] 0.0
        %241 = vst [vmem:[#allocation2 + $0x30] sm:$0xff] 0.0
        %242 = vst [vmem:[#allocation2 + $0x38] sm:$0xff] 0.0
      $region44: #{forward.1} parent=39 // pred_fallthru
        _
      %v243 = vld [vmem:[%s224] sm:$0xff]
      %v244 = vld [vmem:[%s224 + $0x8] sm:$0xff]
      %v245 = vld [vmem:[%s224 + $0x10] sm:$0xff]
      %v246 = vld [vmem:[%s224 + $0x18] sm:$0xff]
      %v247 = vunpack.c.l.bf16 %v243
      %v248 = vunpack.c.h.bf16 %v243
      %v249 = vunpack.c.l.bf16 %v244
      %v250 = vunpack.c.h.bf16 %v244
      %v251 = vunpack.c.l.bf16 %v245
      %v252 = vunpack.c.h.bf16 %v245
      %v253 = vunpack.c.l.bf16 %v246
      %v254 = vunpack.c.h.bf16 %v246
      %v255 = vmax.f32 %v247, 0.0
      %v256 = vmax.f32 %v248, 0.0
      %v257 = vmax.f32 %v249, 0.0
      %v258 = vmax.f32 %v250, 0.0
      %v259 = vmax.f32 %v251, 0.0
      %v260 = vmax.f32 %v252, 0.0
      %v261 = vmax.f32 %v253, 0.0
      %v262 = vmax.f32 %v254, 0.0
      %v263 = vpack.c.bf16 %v257, %v255
      %v264 = vpack.c.bf16 %v258, %v256
      %v265 = vpack.c.bf16 %v261, %v259
      %v266 = vpack.c.bf16 %v262, %v260
      %v267 = vld [vmem:[#allocation2] sm:$0xff]
      %v268 = vld [vmem:[#allocation2 + $0x8] sm:$0xff]
      %v269 = vld [vmem:[#allocation2 + $0x10] sm:$0xff]
      %v270 = vld [vmem:[#allocation2 + $0x18] sm:$0xff]
      %v271 = vld [vmem:[#allocation2 + $0x20] sm:$0xff]
      %v272 = vld [vmem:[#allocation2 + $0x28] sm:$0xff]
      %v273 = vld [vmem:[#allocation2 + $0x30] sm:$0xff]
      %v274 = vld [vmem:[#allocation2 + $0x38] sm:$0xff]
      %v275 = vld [vmem:[%s229] sm:$0xff]
      %v276 = vld [vmem:[%s229 + $0x8] sm:$0xff]
      %v277 = vld [vmem:[%s229 + $0x10] sm:$0xff]
      %v278 = vld [vmem:[%s229 + $0x18] sm:$0xff]
      %v279 = vld [vmem:[%s229 + $0x20] sm:$0xff]
      %v280 = vld [vmem:[%s229 + $0x28] sm:$0xff]
      %v281 = vld [vmem:[%s229 + $0x30] sm:$0xff]
      %v282 = vld [vmem:[%s229 + $0x38] sm:$0xff]
      %v283 = vld [vmem:[%s229 + $0x40] sm:$0xff]
      %v284 = vld [vmem:[%s229 + $0x48] sm:$0xff]
      %v285 = vld [vmem:[%s229 + $0x50] sm:$0xff]
      %v286 = vld [vmem:[%s229 + $0x58] sm:$0xff]
      %v287 = vld [vmem:[%s229 + $0x60] sm:$0xff]
      %v288 = vld [vmem:[%s229 + $0x68] sm:$0xff]
      %v289 = vld [vmem:[%s229 + $0x70] sm:$0xff]
      %v290 = vld [vmem:[%s229 + $0x78] sm:$0xff]
      %v291 = vld [vmem:[%s229 + $0x80] sm:$0xff]
      %v292 = vld [vmem:[%s229 + $0x88] sm:$0xff]
      %v293 = vld [vmem:[%s229 + $0x90] sm:$0xff]
      %v294 = vld [vmem:[%s229 + $0x98] sm:$0xff]
      %v315 = vunpack.c.l.b16 %v275
      %v316 = vunpack.c.h.b16 %v275
      %v317 = vunpack.c.l.b16 %v276
      %v318 = vunpack.c.h.b16 %v276
      %v319 = vunpack.c.l.b16 %v277
      %v320 = vunpack.c.h.b16 %v277
      %v321 = vunpack.c.l.b16 %v278
      %v322 = vunpack.c.h.b16 %v278
      %v323 = vunpack.c.l.b16 %v279
      %v324 = vunpack.c.h.b16 %v279
      %v325 = vunpack.c.l.b16 %v280
      %v326 = vunpack.c.h.b16 %v280
      %v327 = vunpack.c.l.b16 %v281
      %v328 = vunpack.c.h.b16 %v281
      %v329 = vunpack.c.l.b16 %v282
      %v330 = vunpack.c.h.b16 %v282
      %v331 = vunpack.c.l.b16 %v283
      %v332 = vunpack.c.h.b16 %v283
      %v333 = vunpack.c.l.b16 %v284
      %v334 = vunpack.c.h.b16 %v284
      %v335 = vunpack.c.l.b16 %v285
      %v336 = vunpack.c.h.b16 %v285
      %v337 = vunpack.c.l.b16 %v286
      %v338 = vunpack.c.h.b16 %v286
      %v339 = vunpack.c.l.b16 %v287
      %v340 = vunpack.c.h.b16 %v287
      %v341 = vunpack.c.l.b16 %v288
      %v342 = vunpack.c.h.b16 %v288
      %v343 = vunpack.c.l.b16 %v289
      %v344 = vunpack.c.h.b16 %v289
      %v345 = vunpack.c.l.b16 %v290
      %v346 = vunpack.c.h.b16 %v290
      %v347 = vunpack.c.l.b16 %v291
      %v348 = vunpack.c.h.b16 %v291
      %v349 = vunpack.c.l.b16 %v292
      %v350 = vunpack.c.h.b16 %v292
      %v351 = vunpack.c.l.b16 %v293
      %v352 = vunpack.c.h.b16 %v293
      %v353 = vunpack.c.l.b16 %v294
      %v354 = vunpack.c.h.b16 %v294
      %v355 = vpack.c.b16 %v317, %v315
      %v356 = vpack.c.b16 %v318, %v316
      %v357 = vpack.c.b16 %v321, %v319
      %v358 = vpack.c.b16 %v322, %v320
      %v359 = vpack.c.b16 %v325, %v323
      %v360 = vpack.c.b16 %v326, %v324
      %v361 = vpack.c.b16 %v329, %v327
      %v362 = vpack.c.b16 %v330, %v328
      %v363 = vpack.c.b16 %v333, %v331
      %v364 = vpack.c.b16 %v334, %v332
      %v365 = vpack.c.b16 %v337, %v335
      %v366 = vpack.c.b16 %v338, %v336
      %v367 = vpack.c.b16 %v341, %v339
      %v368 = vpack.c.b16 %v342, %v340
      %v369 = vpack.c.b16 %v345, %v343
      %v370 = vpack.c.b16 %v346, %v344
      %v371 = vpack.c.b16 %v349, %v347
      %v372 = vpack.c.b16 %v350, %v348
      %v373 = vpack.c.b16 %v353, %v351
      %v374 = vpack.c.b16 %v354, %v352
      %vm395 = vcmask 261120
      %v397 = vsel %vm395, %v264, 0
      %v400 = vsel %vm395, %v266, 0
      %402 = vmatpush.bf16.msra.mxu0 %v369
      %403 = vmatpush.bf16.msra.mxu0 %v367
      %404 = vmatpush.bf16.msra.mxu0 %v365
      %405 = vmatpush.bf16.msra.mxu0 %v363
      %406 = vmatpush.bf16.msra.mxu0 %v361
      %407 = vmatpush.bf16.msra.mxu0 %v359
      %408 = vmatpush.bf16.msra.mxu0 %v357
      %409 = vmatpush.bf16.msra.mxu0 %v355
      %410 = vmatmul.bf16.gmra.mxu0 %v263
      %v411 = vpop.f32.mrf.mxu0
      %v412 = vadd.f32 0.0, %v411
      %v413 = vpop.f32.mrf.mxu0
      %v414 = vadd.f32 0.0, %v413
      %415 = vmatmul.bf16.gmra.mxu0 %v265
      %v416 = vpop.f32.mrf.mxu0
      %v417 = vadd.f32 0.0, %v416
      %v418 = vpop.f32.mrf.mxu0
      %v419 = vadd.f32 0.0, %v418
      %420 = vdwg.mxu0
      %421 = vmatpush.bf16.msra.mxu0 0
      %422 = vmatpush.bf16.msra.mxu0 0
      %423 = vmatpush.bf16.msra.mxu0 0
      %424 = vmatpush.bf16.msra.mxu0 0
      %425 = vmatpush.bf16.msra.mxu0 0
      %426 = vmatpush.bf16.msra.mxu0 0
      %427 = vmatpush.bf16.msra.mxu0 %v373
      %428 = vmatpush.bf16.msra.mxu0 %v371
      %429 = vmatmul.bf16.gmra.mxu0 %v397
      %v430 = vpop.f32.mrf.mxu0
      %v431 = vadd.f32 %v412, %v430
      %v432 = vpop.f32.mrf.mxu0
      %v433 = vadd.f32 %v414, %v432
      %434 = vmatmul.bf16.gmra.mxu0 %v400
      %v435 = vpop.f32.mrf.mxu0
      %v436 = vadd.f32 %v417, %v435
      %v437 = vpop.f32.mrf.mxu0
      %v438 = vadd.f32 %v419, %v437
      %439 = vdwg.mxu0
      %440 = vmatpush.bf16.msra.mxu0 %v370
      %441 = vmatpush.bf16.msra.mxu0 %v368
      %442 = vmatpush.bf16.msra.mxu0 %v366
      %443 = vmatpush.bf16.msra.mxu0 %v364
      %444 = vmatpush.bf16.msra.mxu0 %v362
      %445 = vmatpush.bf16.msra.mxu0 %v360
      %446 = vmatpush.bf16.msra.mxu0 %v358
      %447 = vmatpush.bf16.msra.mxu0 %v356
      %448 = vmatmul.bf16.gmra.mxu0 %v263
      %v449 = vpop.f32.mrf.mxu0
      %v450 = vadd.f32 0.0, %v449
      %v451 = vpop.f32.mrf.mxu0
      %v452 = vadd.f32 0.0, %v451
      %453 = vmatmul.bf16.gmra.mxu0 %v265
      %v454 = vpop.f32.mrf.mxu0
      %v455 = vadd.f32 0.0, %v454
      %v456 = vpop.f32.mrf.mxu0
      %v457 = vadd.f32 0.0, %v456
      %458 = vdwg.mxu0
      %459 = vmatpush.bf16.msra.mxu0 0
      %460 = vmatpush.bf16.msra.mxu0 0
      %461 = vmatpush.bf16.msra.mxu0 0
      %462 = vmatpush.bf16.msra.mxu0 0
      %463 = vmatpush.bf16.msra.mxu0 0
      %464 = vmatpush.bf16.msra.mxu0 0
      %465 = vmatpush.bf16.msra.mxu0 %v374
      %466 = vmatpush.bf16.msra.mxu0 %v372
      %467 = vmatmul.bf16.gmra.mxu0 %v397
      %v468 = vpop.f32.mrf.mxu0
      %v469 = vadd.f32 %v450, %v468
      %v470 = vpop.f32.mrf.mxu0
      %v471 = vadd.f32 %v452, %v470
      %472 = vmatmul.bf16.gmra.mxu0 %v400
      %v473 = vpop.f32.mrf.mxu0
      %v474 = vadd.f32 %v455, %v473
      %v475 = vpop.f32.mrf.mxu0
      %v476 = vadd.f32 %v457, %v475
      %477 = vdwg.mxu0
      %v478 = vadd.f32 %v267, %v431
      %v479 = vadd.f32 %v268, %v469
      %v480 = vadd.f32 %v269, %v433
      %v481 = vadd.f32 %v270, %v471
      %v482 = vadd.f32 %v271, %v436
      %v483 = vadd.f32 %v272, %v474
      %v484 = vadd.f32 %v273, %v438
      %v485 = vadd.f32 %v274, %v476
      %486 = vst [vmem:[#allocation2] sm:$0xff] %v478
      %487 = vst [vmem:[#allocation2 + $0x8] sm:$0xff] %v479
      %488 = vst [vmem:[#allocation2 + $0x10] sm:$0xff] %v480
      %489 = vst [vmem:[#allocation2 + $0x18] sm:$0xff] %v481
      %490 = vst [vmem:[#allocation2 + $0x20] sm:$0xff] %v482
      %491 = vst [vmem:[#allocation2 + $0x28] sm:$0xff] %v483
      %492 = vst [vmem:[#allocation2 + $0x30] sm:$0xff] %v484
      %493 = vst [vmem:[#allocation2 + $0x38] sm:$0xff] %v485
      %p494 = scmp.eq.s32.totalorder %s16, 2
      // Predicated region
      $region45: #{forward.1} parent=39 // pred_check
        %p495 = pneg %p494
      $region46: #{forward.1} parent=39 // pred_check_branch
        %497 = sbr.rel (%p495) target = $region48
      $region47: #{forward.1} parent=39 // pred_region
        %v498 = vld [vmem:[#allocation2] sm:$0xff]
        %v499 = vld [vmem:[#allocation2 + $0x8] sm:$0xff]
        %v500 = vld [vmem:[#allocation2 + $0x10] sm:$0xff]
        %v501 = vld [vmem:[#allocation2 + $0x18] sm:$0xff]
        %v502 = vld [vmem:[#allocation2 + $0x20] sm:$0xff]
        %v503 = vld [vmem:[#allocation2 + $0x28] sm:$0xff]
        %v504 = vld [vmem:[#allocation2 + $0x30] sm:$0xff]
        %v505 = vld [vmem:[#allocation2 + $0x38] sm:$0xff]
        %v506 = vld [vmem:[%s2] sm:$0xff]
        %v507 = vld [vmem:[%s2 + $0x8] sm:$0xff]
        %v508 = vld [vmem:[%s2 + $0x10] sm:$0xff]
        %v509 = vld [vmem:[%s2 + $0x18] sm:$0xff]
        %v510 = vld [vmem:[%s2 + $0x20] sm:$0xff]
        %v511 = vld [vmem:[%s2 + $0x28] sm:$0xff]
        %v512 = vld [vmem:[%s2 + $0x30] sm:$0xff]
        %v513 = vld [vmem:[%s2 + $0x38] sm:$0xff]
        %v514 = vld [vmem:[%s2 + $0x40] sm:$0xff]
        %v515 = vld [vmem:[%s2 + $0x48] sm:$0xff]
        %v516 = vld [vmem:[%s2 + $0x50] sm:$0xff]
        %v517 = vld [vmem:[%s2 + $0x58] sm:$0xff]
        %v518 = vld [vmem:[%s2 + $0x60] sm:$0xff]
        %v519 = vld [vmem:[%s2 + $0x68] sm:$0xff]
        %v520 = vld [vmem:[%s2 + $0x70] sm:$0xff]
        %v521 = vld [vmem:[%s2 + $0x78] sm:$0xff]
        %v522 = vld [vmem:[%s2 + $0x80] sm:$0xff]
        %v523 = vld [vmem:[%s2 + $0x88] sm:$0xff]
        %v524 = vld [vmem:[%s2 + $0x90] sm:$0xff]
        %v525 = vld [vmem:[%s2 + $0x98] sm:$0xff]
        %v526 = vld [vmem:[%s2 + $0xa0] sm:$0xff]
        %v527 = vld [vmem:[%s2 + $0xa8] sm:$0xff]
        %v528 = vld [vmem:[%s2 + $0xb0] sm:$0xff]
        %v529 = vld [vmem:[%s2 + $0xb8] sm:$0xff]
        %v530 = vld [vmem:[%s2 + $0xc0] sm:$0xff]
        %v531 = vld [vmem:[%s2 + $0xc8] sm:$0xff]
        %v532 = vld [vmem:[%s2 + $0xd0] sm:$0xff]
        %v533 = vld [vmem:[%s2 + $0xd8] sm:$0xff]
        %v534 = vld [vmem:[%s2 + $0xe0] sm:$0xff]
        %v535 = vld [vmem:[%s2 + $0xe8] sm:$0xff]
        %v536 = vld [vmem:[%s2 + $0xf0] sm:$0xff]
        %v537 = vld [vmem:[%s2 + $0xf8] sm:$0xff]
        %v538 = vadd.f32 %v498, %v500
        %v539 = vadd.f32 %v538, %v502
        %v540 = vadd.f32 %v539, %v504
        %v541 = vrot.slane %v540, 4
        %v542 = vadd.f32 %v540, %v541
        %v543 = vrot.slane %v542, 2
        %v544 = vadd.f32 %v542, %v543
        %v545 = vrot.slane %v544, 1
        %v546 = vadd.f32 %v544, %v545
        %v547 = vadd.f32 %v499, %v501
        %v548 = vadd.f32 %v547, %v503
        %v549 = vadd.f32 %v548, %v505
        %v550 = vrot.slane %v549, 4
        %v551 = vadd.f32 %v549, %v550
        %v552 = vrot.slane %v551, 2
        %v553 = vadd.f32 %v551, %v552
        %v554 = vrot.slane %v553, 1
        %v555 = vadd.f32 %v553, %v554
        %556 = vmatpush.msra.mxu0 %v521
        %557 = vmatpush.msra.mxu0 %v520
        %558 = vmatpush.msra.mxu0 %v519
        %559 = vmatpush.msra.mxu0 %v518
        %560 = vmatpush.msra.mxu0 %v517
        %561 = vmatpush.msra.mxu0 %v516
        %562 = vmatpush.msra.mxu0 %v515
        %563 = vmatpush.msra.mxu0 %v514
        %564 = vmatpush.msra.mxu0 %v513
        %565 = vmatpush.msra.mxu0 %v512
        %566 = vmatpush.msra.mxu0 %v511
        %567 = vmatpush.msra.mxu0 %v510
        %568 = vmatpush.msra.mxu0 %v509
        %569 = vmatpush.msra.mxu0 %v508
        %570 = vmatpush.msra.mxu0 %v507
        %571 = vmatpush.msra.mxu0 %v506
        %572 = vmatmul.f32.gmra.mxu0 %v546
        %v573 = vpop.f32.mrf.mxu0
        %v574 = vadd.f32 0.0, %v573
        %575 = vdwg.mxu0
        %576 = vmatpush.msra.mxu0 %v537
        %577 = vmatpush.msra.mxu0 %v536
        %578 = vmatpush.msra.mxu0 %v535
        %579 = vmatpush.msra.mxu0 %v534
        %580 = vmatpush.msra.mxu0 %v533
        %581 = vmatpush.msra.mxu0 %v532
        %582 = vmatpush.msra.mxu0 %v531
        %583 = vmatpush.msra.mxu0 %v530
        %584 = vmatpush.msra.mxu0 %v529
        %585 = vmatpush.msra.mxu0 %v528
        %586 = vmatpush.msra.mxu0 %v527
        %587 = vmatpush.msra.mxu0 %v526
        %588 = vmatpush.msra.mxu0 %v525
        %589 = vmatpush.msra.mxu0 %v524
        %590 = vmatpush.msra.mxu0 %v523
        %591 = vmatpush.msra.mxu0 %v522
        %592 = vmatmul.f32.gmra.mxu0 %v555
        %v593 = vpop.f32.mrf.mxu0
        %v594 = vadd.f32 %v574, %v593
        %595 = vdwg.mxu0
        %v596 = vmul.f32 %v594, 0.001953125
        %vm597 = vcmask 130048
        %v599 = vsel %vm597, %v596, 0
        %v602 = vsel %vm597, %v506, 0
        %v605 = vsel %vm597, %v507, 0
        %v608 = vsel %vm597, %v508, 0
        %v611 = vsel %vm597, %v509, 0
        %v614 = vsel %vm597, %v510, 0
        %v617 = vsel %vm597, %v511, 0
        %v620 = vsel %vm597, %v512, 0
        %v623 = vsel %vm597, %v513, 0
        %v626 = vsel %vm597, %v514, 0
        %v629 = vsel %vm597, %v515, 0
        %v632 = vsel %vm597, %v516, 0
        %v635 = vsel %vm597, %v517, 0
        %v638 = vsel %vm597, %v518, 0
        %v641 = vsel %vm597, %v519, 0
        %v644 = vsel %vm597, %v520, 0
        %v647 = vsel %vm597, %v521, 0
        %v650 = vsel %vm597, %v522, 0
        %v653 = vsel %vm597, %v523, 0
        %v656 = vsel %vm597, %v524, 0
        %v659 = vsel %vm597, %v525, 0
        %v662 = vsel %vm597, %v526, 0
        %v665 = vsel %vm597, %v527, 0
        %v668 = vsel %vm597, %v528, 0
        %v671 = vsel %vm597, %v529, 0
        %v674 = vsel %vm597, %v530, 0
        %v677 = vsel %vm597, %v531, 0
        %v680 = vsel %vm597, %v532, 0
        %v683 = vsel %vm597, %v533, 0
        %v686 = vsel %vm597, %v534, 0
        %v689 = vsel %vm597, %v535, 0
        %v692 = vsel %vm597, %v536, 0
        %v695 = vsel %vm597, %v537, 0
        %697 = vmatpush.xpose.msra.mxu0 %v647
        %698 = vmatpush.xpose.msra.mxu0 %v644
        %699 = vmatpush.xpose.msra.mxu0 %v641
        %700 = vmatpush.xpose.msra.mxu0 %v638
        %701 = vmatpush.xpose.msra.mxu0 %v635
        %702 = vmatpush.xpose.msra.mxu0 %v632
        %703 = vmatpush.xpose.msra.mxu0 %v629
        %704 = vmatpush.xpose.msra.mxu0 %v626
        %705 = vmatpush.xpose.msra.mxu0 %v623
        %706 = vmatpush.xpose.msra.mxu0 %v620
        %707 = vmatpush.xpose.msra.mxu0 %v617
        %708 = vmatpush.xpose.msra.mxu0 %v614
        %709 = vmatpush.xpose.msra.mxu0 %v611
        %710 = vmatpush.xpose.msra.mxu0 %v608
        %711 = vmatpush.xpose.msra.mxu0 %v605
        %712 = vmatpush.xpose.msra.mxu0 %v602
        %713 = vmatmul.f32.gmra.mxu0 %v599
        %v714 = vpop.f32.mrf.mxu0
        %v715 = vadd.f32 0.0, %v714
        %716 = vdwg.mxu0
        %717 = vmatpush.xpose.msra.mxu0 %v695
        %718 = vmatpush.xpose.msra.mxu0 %v692
        %719 = vmatpush.xpose.msra.mxu0 %v689
        %720 = vmatpush.xpose.msra.mxu0 %v686
        %721 = vmatpush.xpose.msra.mxu0 %v683
        %722 = vmatpush.xpose.msra.mxu0 %v680
        %723 = vmatpush.xpose.msra.mxu0 %v677
        %724 = vmatpush.xpose.msra.mxu0 %v674
        %725 = vmatpush.xpose.msra.mxu0 %v671
        %726 = vmatpush.xpose.msra.mxu0 %v668
        %727 = vmatpush.xpose.msra.mxu0 %v665
        %728 = vmatpush.xpose.msra.mxu0 %v662
        %729 = vmatpush.xpose.msra.mxu0 %v659
        %730 = vmatpush.xpose.msra.mxu0 %v656
        %731 = vmatpush.xpose.msra.mxu0 %v653
        %732 = vmatpush.xpose.msra.mxu0 %v650
        %733 = vmatmul.f32.gmra.mxu0 %v599
        %v734 = vpop.f32.mrf.mxu0
        %v735 = vadd.f32 0.0, %v734
        %736 = vdwg.mxu0
        %v737 = vperm.slane %v715, 0
        %v738 = vperm.slane %v735, 0
        %v739 = vsub.f32 %v498, %v737
        %v740 = vsub.f32 %v499, %v738
        %v741 = vsub.f32 %v500, %v737
        %v742 = vsub.f32 %v501, %v738
        %v743 = vsub.f32 %v502, %v737
        %v744 = vsub.f32 %v503, %v738
        %v745 = vsub.f32 %v504, %v737
        %v746 = vsub.f32 %v505, %v738
        %v747 = vmul.f32 %v739, %v739
        %v748 = vmul.f32 %v740, %v740
        %v749 = vmul.f32 %v741, %v741
        %v750 = vmul.f32 %v742, %v742
        %v751 = vmul.f32 %v743, %v743
        %v752 = vmul.f32 %v744, %v744
        %v753 = vmul.f32 %v745, %v745
        %v754 = vmul.f32 %v746, %v746
        %v755 = vadd.f32 %v747, %v749
        %v756 = vadd.f32 %v755, %v751
        %v757 = vadd.f32 %v756, %v753
        %v758 = vrot.slane %v757, 4
        %v759 = vadd.f32 %v757, %v758
        %v760 = vrot.slane %v759, 2
        %v761 = vadd.f32 %v759, %v760
        %v762 = vrot.slane %v761, 1
        %v763 = vadd.f32 %v761, %v762
        %v764 = vadd.f32 %v748, %v750
        %v765 = vadd.f32 %v764, %v752
        %v766 = vadd.f32 %v765, %v754
        %v767 = vrot.slane %v766, 4
        %v768 = vadd.f32 %v766, %v767
        %v769 = vrot.slane %v768, 2
        %v770 = vadd.f32 %v768, %v769
        %v771 = vrot.slane %v770, 1
        %v772 = vadd.f32 %v770, %v771
        %773 = vmatpush.msra.mxu0 %v521
        %774 = vmatpush.msra.mxu0 %v520
        %775 = vmatpush.msra.mxu0 %v519
        %776 = vmatpush.msra.mxu0 %v518
        %777 = vmatpush.msra.mxu0 %v517
        %778 = vmatpush.msra.mxu0 %v516
        %779 = vmatpush.msra.mxu0 %v515
        %780 = vmatpush.msra.mxu0 %v514
        %781 = vmatpush.msra.mxu0 %v513
        %782 = vmatpush.msra.mxu0 %v512
        %783 = vmatpush.msra.mxu0 %v511
        %784 = vmatpush.msra.mxu0 %v510
        %785 = vmatpush.msra.mxu0 %v509
        %786 = vmatpush.msra.mxu0 %v508
        %787 = vmatpush.msra.mxu0 %v507
        %788 = vmatpush.msra.mxu0 %v506
        %789 = vmatmul.f32.gmra.mxu0 %v763
        %v790 = vpop.f32.mrf.mxu0
        %v791 = vadd.f32 0.0, %v790
        %792 = vdwg.mxu0
        %793 = vmatpush.msra.mxu0 %v537
        %794 = vmatpush.msra.mxu0 %v536
        %795 = vmatpush.msra.mxu0 %v535
        %796 = vmatpush.msra.mxu0 %v534
        %797 = vmatpush.msra.mxu0 %v533
        %798 = vmatpush.msra.mxu0 %v532
        %799 = vmatpush.msra.mxu0 %v531
        %800 = vmatpush.msra.mxu0 %v530
        %801 = vmatpush.msra.mxu0 %v529
        %802 = vmatpush.msra.mxu0 %v528
        %803 = vmatpush.msra.mxu0 %v527
        %804 = vmatpush.msra.mxu0 %v526
        %805 = vmatpush.msra.mxu0 %v525
        %806 = vmatpush.msra.mxu0 %v524
        %807 = vmatpush.msra.mxu0 %v523
        %808 = vmatpush.msra.mxu0 %v522
        %809 = vmatmul.f32.gmra.mxu0 %v772
        %v810 = vpop.f32.mrf.mxu0
        %v811 = vadd.f32 %v791, %v810
        %812 = vdwg.mxu0
        %v813 = vmul.f32 %v811, 0.001953125
        %v814 = vld [vmem:[%s3] sm:$0x1]
        %v815 = vadd.f32 %v813, 1e-05
        %v816 = vrsqrt.pop %v815
        %v817 = vmul.f32 %v816, %v815
        %v818 = vmul.f32 %v817, %v816
        %v819 = vmul.f32 0.5, %v818
        %v820 = vsub.f32 1.5, %v819
        %v821 = vmul.f32 %v816, %v820
        %vm822 = vweird.f32 %v815
        %vm823 = vweird.f32 %v816
        %vm824 = vmor %vm822, %vm823
        %v825 = vsel %vm824, %v816, %v821
        %v826 = vmul.f32 %v814, %v825
        %v827 = vld [vmem:[%s4] sm:$0x1]
        %v828 = vmul.f32 %v596, %v826
        %v829 = vsub.f32 %v827, %v828
        %v830 = vlaneseq
        %v831 = vshrl.u32 %v830, 7
        %vm832 = vcmp.eq.s32.totalorder %v831, 0
        %v834 = vperm.slane %v826, 0
        %v837 = vperm.slane %v829, 0
        %v839 = vsel %vm832, %v834, %v837
        %v841 = vsel %vm597, %v839, 0
        %843 = vmatpush.xpose.msra.mxu0 %v647
        %844 = vmatpush.xpose.msra.mxu0 %v644
        %845 = vmatpush.xpose.msra.mxu0 %v641
        %846 = vmatpush.xpose.msra.mxu0 %v638
        %847 = vmatpush.xpose.msra.mxu0 %v635
        %848 = vmatpush.xpose.msra.mxu0 %v632
        %849 = vmatpush.xpose.msra.mxu0 %v629
        %850 = vmatpush.xpose.msra.mxu0 %v626
        %851 = vmatpush.xpose.msra.mxu0 %v623
        %852 = vmatpush.xpose.msra.mxu0 %v620
        %853 = vmatpush.xpose.msra.mxu0 %v617
        %854 = vmatpush.xpose.msra.mxu0 %v614
        %855 = vmatpush.xpose.msra.mxu0 %v611
        %856 = vmatpush.xpose.msra.mxu0 %v608
        %857 = vmatpush.xpose.msra.mxu0 %v605
        %858 = vmatpush.xpose.msra.mxu0 %v602
        %859 = vmatmul.f32.gmra.mxu0 %v841
        %v860 = vpop.f32.mrf.mxu0
        %v861 = vadd.f32 0.0, %v860
        %862 = vdwg.mxu0
        %863 = vmatpush.xpose.msra.mxu0 %v695
        %864 = vmatpush.xpose.msra.mxu0 %v692
        %865 = vmatpush.xpose.msra.mxu0 %v689
        %866 = vmatpush.xpose.msra.mxu0 %v686
        %867 = vmatpush.xpose.msra.mxu0 %v683
        %868 = vmatpush.xpose.msra.mxu0 %v680
        %869 = vmatpush.xpose.msra.mxu0 %v677
        %870 = vmatpush.xpose.msra.mxu0 %v674
        %871 = vmatpush.xpose.msra.mxu0 %v671
        %872 = vmatpush.xpose.msra.mxu0 %v668
        %873 = vmatpush.xpose.msra.mxu0 %v665
        %874 = vmatpush.xpose.msra.mxu0 %v662
        %875 = vmatpush.xpose.msra.mxu0 %v659
        %876 = vmatpush.xpose.msra.mxu0 %v656
        %877 = vmatpush.xpose.msra.mxu0 %v653
        %878 = vmatpush.xpose.msra.mxu0 %v650
        %879 = vmatmul.f32.gmra.mxu0 %v841
        %v880 = vpop.f32.mrf.mxu0
        %v881 = vadd.f32 0.0, %v880
        %882 = vdwg.mxu0
        %v883 = vperm.slane %v861, 0
        %v884 = vperm.slane %v881, 0
        %v885 = vmul.f32 %v498, %v883
        %v886 = vmul.f32 %v499, %v884
        %v887 = vmul.f32 %v500, %v883
        %v888 = vmul.f32 %v501, %v884
        %v889 = vmul.f32 %v502, %v883
        %v890 = vmul.f32 %v503, %v884
        %v891 = vmul.f32 %v504, %v883
        %v892 = vmul.f32 %v505, %v884
        %v893 = vperm.slane %v861, 1
        %v894 = vperm.slane %v881, 1
        %v895 = vadd.f32 %v885, %v893
        %v896 = vadd.f32 %v886, %v894
        %v897 = vadd.f32 %v887, %v893
        %v898 = vadd.f32 %v888, %v894
        %v899 = vadd.f32 %v889, %v893
        %v900 = vadd.f32 %v890, %v894
        %v901 = vadd.f32 %v891, %v893
        %v902 = vadd.f32 %v892, %v894
        %903 = vst [vmem:[%s5] sm:$0xff] %v895
        %904 = vst [vmem:[%s5 + $0x8] sm:$0xff] %v896
        %905 = vst [vmem:[%s5 + $0x10] sm:$0xff] %v897
        %906 = vst [vmem:[%s5 + $0x18] sm:$0xff] %v898
        %907 = vst [vmem:[%s5 + $0x20] sm:$0xff] %v899
        %908 = vst [vmem:[%s5 + $0x28] sm:$0xff] %v900
        %909 = vst [vmem:[%s5 + $0x30] sm:$0xff] %v901
        %910 = vst [vmem:[%s5 + $0x38] sm:$0xff] %v902
      $region48: #{forward.1} parent=39 // pred_fallthru
        _
      // Predicated region
      $region49: #{forward.1} parent=39 // pred_check
        %p911 = pneg %p144
      $region50: #{forward.1} parent=39 // pred_check_branch
        %913 = sbr.rel (%p911) target = $region52
      $region51: #{forward.1} parent=39 // pred_region
        _
      $region52: #{forward.1} parent=39 // pred_fallthru
        _
      // Predicated region
      $region53: #{forward.1} parent=39 // pred_check
        %p914 = pneg %p144
      $region54: #{forward.1} parent=39 // pred_check_branch
        %916 = sbr.rel (%p914) target = $region56
      $region55: #{forward.1} parent=39 // pred_region
        _
      $region56: #{forward.1} parent=39 // pred_fallthru
        _
    $region40: #{forward.1} parent=5 // pred_fallthru
      _
    %p917 = scmp.le.s32.totalorder 2, %s11
    // Predicated region
    $region57: #{forward.1} parent=5 // pred_check
      %p918 = pneg %p917
    $region58: #{forward.1} parent=5 // pred_check_branch
      %920 = sbr.rel (%p918) target = $region60
    $region59: #{forward.1} parent=5 // pred_region
      %s921 = ssub.s32 %s11, 2
    $region60: #{forward.1} parent=5 // pred_fallthru
      _
  $region6: #{forward.1} parent=0 // loop_footer
    %s15 = sadd.s32 1, %s11
  $region7: #{forward.1} parent=0 // loop_footer_branch
    %10 = sbr.rel target = $region3
  $region8: #{forward.1} parent=0 // loop_exit
    _

</llo_original>
